<compile_context>
chip_gen: v7x
topology: tpu7x:2x2x1
jax: 0.10.0
libtpu: 0.0.40
codegen_flags: <defaults>
</compile_context>

<pallas_src>
import functools

import jax
import jax.numpy as jnp
from jax.experimental import pallas as pl
from jax.experimental.pallas import tpu as pltpu


def _complex_relu_kernel(real_ref, imag_ref, out_real_ref, out_imag_ref):
    real = real_ref[...]
    imag = imag_ref[...]
    # mask-multiply formulation keeps PyTorch's NaN (0*NaN=NaN) / -0.0 behavior.
    mask = (real >= 0).astype(real.dtype)
    out_real_ref[...] = mask * real
    out_imag_ref[...] = mask * imag


def _sublane_multiple(dtype) -> int:
    itemsize = jnp.dtype(dtype).itemsize
    if itemsize >= 4:
        return 8
    if itemsize == 2:
        return 16
    return 32


def _pick_lane_width(total: int) -> int:
    """Largest lane-dense width that divides `total`, else 0 (no reshape)."""
    for lane in (2048, 1024, 512, 256, 128):
        if total % lane == 0:
            return lane
    return 0


@functools.lru_cache(maxsize=None)
def _chip_config():
    """Generation-gated tiling constants (v5e/v6e vs v7x / unknown)."""
    vmem_cap = None
    try:
        vmem_cap = getattr(pltpu.get_tpu_info(), "vmem_capacity_bytes", None)
    except Exception:
        vmem_cap = None
    if vmem_cap is None:
        try:
            kind = jax.devices()[0].device_kind.lower()
            if "v5" in kind or "v6" in kind:
                vmem_cap = 128 << 20
        except Exception:
            pass
    if vmem_cap is not None and vmem_cap > (64 << 20):
        # v5e / v6e: 128 MiB physical VMEM, single TensorCore, slower HBM.
        # 8 MiB/array tile -> 4 arrays x 2 buffers = 64 MiB of tiles.
        return dict(target_tile_bytes=8 << 20,
                    vmem_limit_bytes=96 << 20,
                    two_cores=False)
    # v7x (64 MiB physical VMEM, 2 TensorCores) or unknown chip: conservative,
    # VMEM-capped.  4 MiB/array tile -> 32 MiB of double-buffered tiles.
    return dict(target_tile_bytes=4 << 20,
                vmem_limit_bytes=44 << 20,
                two_cores=True)


def _row_tile(rows: int, row_bytes: int, sub: int,
              target_tile_bytes: int, two_cores: bool) -> int:
    """Pick a sublane-aligned row-tile size."""
    if rows <= sub:
        return rows  # full extent along the sublane axis is always legal
    tm = max(sub, (target_tile_bytes // row_bytes) // sub * sub)
    tm = min(tm, (rows // sub) * sub)
    if two_cores:
        # Even step count so both v7x TensorCores get balanced work
        # (dimension_semantics=("parallel",) shards the grid across them).
        steps = pl.cdiv(rows, tm)
        steps += steps % 2
        tm = max(sub, pl.cdiv(pl.cdiv(rows, steps), sub) * sub)
    return tm


def complex_relu(real: jax.Array, imag: jax.Array, *,
                 min_kernel_bytes: int = 256 << 10,
                 alias_inputs: bool = False):
    """Complex ReLU via a Pallas TPU kernel.

    real, imag: float arrays of identical shape & dtype (node features).
    Returns (real_out, imag_out) with the same shapes/dtypes.
    """
    assert real.shape == imag.shape, "real/imag must share a shape"
    assert real.dtype == imag.dtype, "real/imag must share a dtype"

    orig_shape = real.shape
    dtype = real.dtype
    itemsize = jnp.dtype(dtype).itemsize
    total = real.size

    # Tiny inputs: a one-step Pallas call pays fixed launch + DMA-setup cost
    # that XLA elementwise fusion avoids entirely.
    if total == 0 or total * itemsize < min_kernel_bytes:
        mask = (real >= 0).astype(dtype)
        return mask * real, mask * imag

    cfg = _chip_config()
    sub = _sublane_multiple(dtype)

    lane = _pick_lane_width(total)
    if lane:
        # Lane-dense slab: pure reshape, no padding / output slicing needed,
        # so HBM traffic stays at the 4x-bytes minimum and stores are
        # unmasked `vst`.
        rows = total // lane
    else:
        # Element count not 128-divisible: keep the native trailing dim as
        # the lane axis (full-extent last block dim is always legal) instead
        # of materializing padded copies + sliced outputs.
        lane = orig_shape[-1] if len(orig_shape) >= 2 else total
        rows = total // lane
    real2 = real.reshape(rows, lane)
    imag2 = imag.reshape(rows, lane)

    tm = _row_tile(rows, lane * itemsize, sub,
                   cfg["target_tile_bytes"], cfg["two_cores"])
    grid = (pl.cdiv(rows, tm),)
    # Ragged last row-block (rows % tm != 0) relies on Pallas clipping
    # out-of-bounds writes at the grid boundary — correct by construction.
    spec = pl.BlockSpec((tm, lane), lambda i: (i, 0))

    out_shape = (jax.ShapeDtypeStruct((rows, lane), dtype),
                 jax.ShapeDtypeStruct((rows, lane), dtype))

    extra_kwargs = {}
    if alias_inputs:
        # Only profitable when the caller donates real/imag; otherwise XLA
        # inserts defensive copies which would *add* HBM traffic.
        extra_kwargs["input_output_aliases"] = {0: 0, 1: 1}

    out_real2, out_imag2 = pl.pallas_call(
        _complex_relu_kernel,
        out_shape=out_shape,
        grid_spec=pltpu.PrefetchScalarGridSpec(
            num_scalar_prefetch=0,
            grid=grid,
            in_specs=[spec, spec],
            out_specs=[spec, spec],
        ),
        compiler_params=pltpu.CompilerParams(
            dimension_semantics=("parallel",),
            vmem_limit_bytes=cfg["vmem_limit_bytes"],
        ),
        cost_estimate=pl.CostEstimate(
            flops=3 * total,
            transcendentals=0,
            bytes_accessed=4 * total * itemsize,
        ),
        **extra_kwargs,
    )(real2, imag2)

    return out_real2.reshape(orig_shape), out_imag2.reshape(orig_shape)


def complex_relu_ref(real, imag):
    mask = (real >= 0).astype(real.dtype)
    return mask * real, mask * imag


def _check(shape, key, **kwargs):
    k1, k2 = jax.random.split(key)
    real = jax.random.normal(k1, shape, dtype=jnp.float32)
    imag = jax.random.normal(k2, shape, dtype=jnp.float32)
    out_real, out_imag = complex_relu(real, imag, **kwargs)
    jax.block_until_ready(out_real)
    jax.block_until_ready(out_imag)
    ref_real, ref_imag = complex_relu_ref(real, imag)
    assert jnp.allclose(out_real, ref_real), f"real mismatch {shape}"
    assert jnp.allclose(out_imag, ref_imag), f"imag mismatch {shape}"


if __name__ == "__main__":
    key = jax.random.PRNGKey(0)
    k0, k1, k2, k3, k4 = jax.random.split(key, 5)

    # Small node-feature matrix: tiny-input jnp fallback path.
    _check((16, 32), k0)
    # Same small shape, forced through the Pallas kernel (lane-dense slab).
    _check((16, 32), k1, min_kernel_bytes=0)
    # Odd shape, forced through the kernel (non-128-divisible, native-F path).
    _check((13, 17), k2, min_kernel_bytes=0)
    # Moderately larger shape: lane-dense, multi-step row tiling.
    _check((1024, 256), k3)
    # Larger non-128-divisible shape: kernel path without any pad/slice.
    _check((513, 129), k4)

    print("KERNEL_OK")
</pallas_src>

<mosaic_0001>
module attributes {stable_mosaic.version = 11 : i64} {
  func.func @_complex_relu_kernel(%arg0: i32, %arg1: memref<1x512xf32, #tpu.memory_space<vmem>>, %arg2: memref<1x512xf32, #tpu.memory_space<vmem>>, %arg3: memref<1x512xf32, #tpu.memory_space<vmem>>, %arg4: memref<1x512xf32, #tpu.memory_space<vmem>>) attributes {dimension_semantics = [#tpu.dimension_semantics<parallel>], iteration_bounds = array<i64: 1>, scalar_prefetch = 0 : i64, scratch_operands = 0 : i64, tpu.core_type = #tpu.core_type<tc>, window_params = [{transform_indices = @transform_0, window_bounds = array<i64: 1, 512>}, {transform_indices = @transform_1, window_bounds = array<i64: 1, 512>}, {transform_indices = @transform_2, window_bounds = array<i64: 1, 512>}, {transform_indices = @transform_3, window_bounds = array<i64: 1, 512>}]} {
    %c0 = arith.constant 0 : index
    %c0_0 = arith.constant 0 : index
    %0 = vector.load %arg1[%c0, %c0_0] : memref<1x512xf32, #tpu.memory_space<vmem>>, vector<1x512xf32>
    %c0_1 = arith.constant 0 : index
    %c0_2 = arith.constant 0 : index
    %1 = vector.load %arg2[%c0_1, %c0_2] : memref<1x512xf32, #tpu.memory_space<vmem>>, vector<1x512xf32>
    %cst = arith.constant 0.000000e+00 : f32
    %2 = vector.broadcast %cst : f32 to vector<1x512xf32>
    %3 = arith.cmpf oge, %0, %2 : vector<1x512xf32>
    %4 = arith.extui %3 : vector<1x512xi1> to vector<1x512xi32>
    %5 = arith.sitofp %4 : vector<1x512xi32> to vector<1x512xf32>
    %6 = arith.mulf %5, %0 : vector<1x512xf32>
    %c0_3 = arith.constant 0 : index
    %c0_4 = arith.constant 0 : index
    %7 = vector.load %arg3[%c0_3, %c0_4] : memref<1x512xf32, #tpu.memory_space<vmem>>, vector<1x512xf32>
    tpu.vector_store %arg3[%c0_3, %c0_4], %6 {strides = array<i32>} : memref<1x512xf32, #tpu.memory_space<vmem>>, vector<1x512xf32>,
    %8 = arith.mulf %5, %1 : vector<1x512xf32>
    %c0_5 = arith.constant 0 : index
    %c0_6 = arith.constant 0 : index
    %9 = vector.load %arg4[%c0_5, %c0_6] : memref<1x512xf32, #tpu.memory_space<vmem>>, vector<1x512xf32>
    tpu.vector_store %arg4[%c0_5, %c0_6], %8 {strides = array<i32>} : memref<1x512xf32, #tpu.memory_space<vmem>>, vector<1x512xf32>,
    return
  }
  func.func @transform_0(%arg0: i32) -> (i32, i32) {
    %c0_i32 = arith.constant 0 : i32
    %c0_i32_0 = arith.constant 0 : i32
    return %arg0, %c0_i32 : i32, i32
  }
  func.func @transform_1(%arg0: i32) -> (i32, i32) {
    %c0_i32 = arith.constant 0 : i32
    %c0_i32_0 = arith.constant 0 : i32
    return %arg0, %c0_i32 : i32, i32
  }
  func.func @transform_2(%arg0: i32) -> (i32, i32) {
    %c0_i32 = arith.constant 0 : i32
    %c0_i32_0 = arith.constant 0 : i32
    return %arg0, %c0_i32 : i32, i32
  }
  func.func @transform_3(%arg0: i32) -> (i32, i32) {
    %c0_i32 = arith.constant 0 : i32
    %c0_i32_0 = arith.constant 0 : i32
    return %arg0, %c0_i32 : i32, i32
  }
}

</mosaic_0001>

<llo_original>
// kernel: tpu_custom_call.1
$region0: #{tpu_custom_call.1}
  #allocation0 [shape = 'u32[]', space=smem, size = 0x4, offset = 0x4, fixed_abs, tag = 'smem constant byte address 0x4 - core index']
  #allocation1 [shape = 'u32[144,128]{1,0:T(1,128)}', space=vmem, size = 0x12000, scoped, tag = 'internal scratch']
  %s0 = inlined_call_operand.hbm [shape: f32[1,512], index: 0, kind: input, shape index: {}]
  %s1 = inlined_call_operand.hbm [shape: f32[1,512], index: 1, kind: input, shape index: {}]
  %s2 = inlined_call_operand.hbm [shape: f32[1,512], index: 2, kind: output, shape index: {0}]
  %s3 = inlined_call_operand.hbm [shape: f32[1,512], index: 3, kind: output, shape index: {1}]
  %4 = xla_tuple %s2, %s3
  %s5 = sld [smem:[#allocation0]]
  $region34: #{tpu_custom_call.1} parent=0
    _
  %s7 = ssub.s32 1, %s5
  %s8 = scalar_select 0, %s7, %s5
  $region1: #{tpu_custom_call.1} parent=0
    #allocation2 [shape = 'u8[2048]{0}', space=vmem, size = 0x800, scoped, tag = 'input window, operand 0, single buffered']
    #allocation3 [shape = 's32[1]{0}', space=sflag, size = 0x4, scoped, tag = 'scoped memory for tpu_custom_call.1']
    #allocation4 [shape = 's32[1]{0}', space=sflag, size = 0x4, scoped, tag = 'scoped memory for tpu_custom_call.1']
    #allocation5 [shape = 'u8[2048]{0}', space=vmem, size = 0x800, scoped, tag = 'input window, operand 1, single buffered']
    #allocation6 [shape = 's32[1]{0}', space=sflag, size = 0x4, scoped, tag = 'scoped memory for tpu_custom_call.1']
    #allocation7 [shape = 'u8[2048]{0}', space=vmem, size = 0x800, scoped, tag = 'output window, operand 0, single buffered']
    #allocation8 [shape = 'u8[2048]{0}', space=vmem, size = 0x800, scoped, tag = 'output window, operand 1, single buffered']
    #allocation9 [shape = 's32[1]{0}', space=sflag, size = 0x4, scoped, tag = 'scoped memory for tpu_custom_call.1']
    %9 = vsyncpa [#allocation3], 0
    %10 = vsyncpa [#allocation6], 0
    %11 = vsyncpa [#allocation4], 0
    %12 = vsyncpa [#allocation9], 0
    // Predicated region
    $region2: #{tpu_custom_call.1} parent=1 // pred_check
      _
    $region3: #{tpu_custom_call.1} parent=1 // pred_check_branch
      %14 = sbr.rel (0) target = $region5
    $region4: #{tpu_custom_call.1} parent=1 // pred_region
      %s16 = ssub.s32 64, 64
      %17 = vsyncadd [#allocation3], %s16
      %s19 = sshll.u32 [#allocation2], 4
      %s20 = int_to_ptr.vmem [resolvable:$true] %s19
      %22 = dma.hbm_to_vmem [thread:$0]  %s0, 64, %s20, [#allocation3]
    $region5: #{tpu_custom_call.1} parent=1 // pred_fallthru
      _
    // Predicated region
    $region6: #{tpu_custom_call.1} parent=1 // pred_check
      _
    $region7: #{tpu_custom_call.1} parent=1 // pred_check_branch
      %24 = sbr.rel (0) target = $region9
    $region8: #{tpu_custom_call.1} parent=1 // pred_region
      %s26 = ssub.s32 64, 64
      %27 = vsyncadd [#allocation6], %s26
      %s29 = sshll.u32 [#allocation5], 4
      %s30 = int_to_ptr.vmem [resolvable:$true] %s29
      %32 = dma.hbm_to_vmem [thread:$0]  %s1, 64, %s30, [#allocation6]
    $region9: #{tpu_custom_call.1} parent=1 // pred_fallthru
      _
    // Predicated region
    $region10: #{tpu_custom_call.1} parent=1 // pred_check
      _
    $region11: #{tpu_custom_call.1} parent=1 // pred_check_branch
      %34 = sbr.rel (0) target = $region13
    $region12: #{tpu_custom_call.1} parent=1 // pred_region
      %35 = dma.done [#allocation3], 64
    $region13: #{tpu_custom_call.1} parent=1 // pred_fallthru
      _
    // Predicated region
    $region14: #{tpu_custom_call.1} parent=1 // pred_check
      _
    $region15: #{tpu_custom_call.1} parent=1 // pred_check_branch
      %37 = sbr.rel (0) target = $region17
    $region16: #{tpu_custom_call.1} parent=1 // pred_region
      %38 = dma.done [#allocation6], 64
    $region17: #{tpu_custom_call.1} parent=1 // pred_fallthru
      _
    %v39 = vld [vmem:[#allocation2] sm:$0xf]
    %v40 = vld [vmem:[#allocation5] sm:$0xf]
    %vm41 = vcmp.ge.f32.partialorder %v39, 0.0
    %v42 = vsel %vm41, 1, 0
    %v43 = vcvt.s32.f32 %v42
    %v44 = vmul.f32 %v43, %v39
    %v45 = vlaneseq
    %vm46 = vcmp.ge.s32.totalorder %v45, 0
    %vm47 = vcmp.lt.s32.totalorder %v45, 512
    %vm48 = vmand %vm46, %vm47
    %49 = vst.msk [vmem:[#allocation7] sm:$0xf] %vm48, %v44
    %v50 = vmul.f32 %v43, %v40
    %51 = vst.msk [vmem:[#allocation8] sm:$0xf] %vm48, %v50
    // Predicated region
    $region18: #{tpu_custom_call.1} parent=1 // pred_check
      _
    $region19: #{tpu_custom_call.1} parent=1 // pred_check_branch
      %53 = sbr.rel (0) target = $region21
    $region20: #{tpu_custom_call.1} parent=1 // pred_region
      %s55 = ssub.s32 64, 64
      %56 = vsyncadd [#allocation4], %s55
      %s58 = sshll.u32 [#allocation7], 4
      %s59 = int_to_ptr.vmem [resolvable:$true] %s58
      %61 = dma.vmem_to_hbm [thread:$0]  %s59, 64, %s2, [#allocation4]
    $region21: #{tpu_custom_call.1} parent=1 // pred_fallthru
      _
    // Predicated region
    $region22: #{tpu_custom_call.1} parent=1 // pred_check
      _
    $region23: #{tpu_custom_call.1} parent=1 // pred_check_branch
      %63 = sbr.rel (0) target = $region25
    $region24: #{tpu_custom_call.1} parent=1 // pred_region
      %s65 = ssub.s32 64, 64
      %66 = vsyncadd [#allocation9], %s65
      %s68 = sshll.u32 [#allocation8], 4
      %s69 = int_to_ptr.vmem [resolvable:$true] %s68
      %71 = dma.vmem_to_hbm [thread:$0]  %s69, 64, %s3, [#allocation9]
    $region25: #{tpu_custom_call.1} parent=1 // pred_fallthru
      _
    // Predicated region
    $region26: #{tpu_custom_call.1} parent=1 // pred_check
      _
    $region27: #{tpu_custom_call.1} parent=1 // pred_check_branch
      %73 = sbr.rel (0) target = $region29
    $region28: #{tpu_custom_call.1} parent=1 // pred_region
      %74 = dma.done [#allocation4], 64
    $region29: #{tpu_custom_call.1} parent=1 // pred_fallthru
      _
    // Predicated region
    $region30: #{tpu_custom_call.1} parent=1 // pred_check
      _
    $region31: #{tpu_custom_call.1} parent=1 // pred_check_branch
      %76 = sbr.rel (0) target = $region33
    $region32: #{tpu_custom_call.1} parent=1 // pred_region
      %77 = dma.done [#allocation9], 64
    $region33: #{tpu_custom_call.1} parent=1 // pred_fallthru
      _
    %78 = vsyncpa [#allocation3], 1
    %79 = vsyncpa [#allocation6], 1
    %80 = vsyncpa [#allocation4], 1
    %81 = vsyncpa [#allocation9], 1

</llo_original>
